<compile_context>
chip_gen: v7x
topology: tpu7x:2x2x1
jax: 0.10.0
libtpu: 0.0.40
codegen_flags: <defaults>
</compile_context>

<pallas_src>
import numpy as np
import jax
import jax.numpy as jnp
from jax.experimental import pallas as pl
from jax.experimental.pallas import tpu as pltpu


def _fused_dft_matrices(H, W):
    """Fused 2-D DFT matrices (float64 math at trace time, returned as bf16).

    fwd[0], fwd[1]: (H*Wf, H*W)  real / imag of the (unnormalized) 2-D rFFT.
    inv[0], inv[1]: (H*W, H*Wf)  real / imag of the 2-D irFFT with hermitian
                                 multiplicities and the combined ortho scale
                                 1/(H*W) folded in.
    """
    Wf = W // 2 + 1
    g = np.arange(H)
    h = np.arange(H)
    f = np.arange(Wf)
    w = np.arange(W)
    # ang[g, f, h, w] = 2*pi*(g*h/H + f*w/W)
    ang = 2.0 * np.pi * ((np.outer(g, h) / H)[:, None, :, None]
                         + (np.outer(f, w) / W)[None, :, None, :])
    fre = np.cos(ang).reshape(H * Wf, H * W)
    fim = (-np.sin(ang)).reshape(H * Wf, H * W)

    # Hermitian multiplicity along the rFFT (W) axis: DC and (even W) Nyquist
    # bins count once, everything else twice; combined ortho scale folded in.
    m = np.full((Wf,), 2.0)
    m[0] = 1.0
    if W % 2 == 0:
        m[-1] = 1.0
    s = (m / float(H * W))[None, :, None, None]                     # (1, Wf, 1, 1)
    ire = (s * np.cos(ang)).transpose(2, 3, 0, 1).reshape(H * W, H * Wf)
    iim = (s * np.sin(ang)).transpose(2, 3, 0, 1).reshape(H * W, H * Wf)

    fwd = jnp.asarray(np.stack([fre, fim])).astype(jnp.bfloat16)    # (2, H*Wf, H*W)
    inv = jnp.asarray(np.stack([ire, iim])).astype(jnp.bfloat16)    # (2, H*W, H*Wf)
    return fwd, inv


def _global_filter_kernel(x_ref, fwd_ref, inv_ref, w_ref, o_ref):
    fre = fwd_ref[0]                        # (HWf, S)  bf16  forward 2-D DFT (real)
    fim = fwd_ref[1]                        # (HWf, S)  bf16  forward 2-D DFT (imag)
    ire = inv_ref[0]                        # (S, HWf)  bf16  inverse (scale folded)
    iim = inv_ref[1]                        # (S, HWf)  bf16
    wr = w_ref[0]                           # (HWf, C)  f32   filter weights
    wi = w_ref[1]                           # (HWf, C)  f32

    def apply(x_sc):                        # (S, C) -> (S, C), C stays on lanes
        xb = x_sc.astype(jnp.bfloat16)
        xr = jnp.dot(fre, xb, preferred_element_type=jnp.float32)    # (HWf, C)
        xi = jnp.dot(fim, xb, preferred_element_type=jnp.float32)    # (HWf, C)
        zr = (xr * wr - xi * wi).astype(jnp.bfloat16)                # complex filter
        zi = (xr * wi + xi * wr).astype(jnp.bfloat16)
        return (jnp.dot(ire, zr, preferred_element_type=jnp.float32)
                - jnp.dot(iim, zi, preferred_element_type=jnp.float32))

    # Static (trace-time) loop over the small per-step batch tile.
    for b in range(x_ref.shape[0]):
        o_ref[b] = apply(x_ref[b]).astype(o_ref.dtype)


def _pick_batch_block(B, S, C, max_bytes=2 << 20):
    """Largest divisor of B s.t. one x block stays under ~max_bytes (safe for
    v7x's 64 MiB VMEM) while keeping >= 2 grid steps when B >= 2 (so both v7x
    TensorCores get work)."""
    cap = max(1, max_bytes // (S * C * 4))
    upper = min(cap, max(1, B // 2)) if B >= 2 else 1
    tb = 1
    for d in range(1, B + 1):
        if B % d == 0 and d <= upper:
            tb = d
    return tb


def global_filter(x_bhwc, complex_weight):
    """x_bhwc: (B, H, W, C) float32; complex_weight: (H, W//2+1, C, 2) float32."""
    B, H, W, C = x_bhwc.shape
    Wf = W // 2 + 1
    assert complex_weight.shape == (H, Wf, C, 2)
    S, HWf = H * W, H * Wf

    fwd, inv = _fused_dft_matrices(H, W)                           # bf16 constants
    x = x_bhwc.reshape(B, S, C)                                    # free view, channel-last
    wri = jnp.moveaxis(complex_weight.reshape(HWf, C, 2), -1, 0)   # (2, HWf, C), tiny

    tb = _pick_batch_block(B, S, C)
    xo_block = (tb, S, C)                                          # last 2 dims = full extents

    out = pl.pallas_call(
        _global_filter_kernel,
        out_shape=jax.ShapeDtypeStruct((B, S, C), x_bhwc.dtype),
        grid=(B // tb,),
        in_specs=[
            pl.BlockSpec(xo_block, lambda i: (i, 0, 0)),           # x, tb images per step
            pl.BlockSpec((2, HWf, S), lambda i: (0, 0, 0)),        # fused forward DFT
            pl.BlockSpec((2, S, HWf), lambda i: (0, 0, 0)),        # fused inverse DFT
            pl.BlockSpec((2, HWf, C), lambda i: (0, 0, 0)),        # filter (re, im)
        ],
        out_specs=pl.BlockSpec(xo_block, lambda i: (i, 0, 0)),
        compiler_params=pltpu.CompilerParams(dimension_semantics=("parallel",)),
    )(x, fwd, inv, wri)

    return out.reshape(B, H, W, C)


if __name__ == "__main__":
    # Shapes consistent with the module defaults: h=14, w=8  =>  H=14, W=14, Wf=8.
    B, H, W, C = 2, 14, 14, 16
    key = jax.random.PRNGKey(0)
    kx, kw = jax.random.split(key)
    x = jax.random.normal(kx, (B, H, W, C), dtype=jnp.float32)
    # Deterministic synthetic parameter, same shape/scale as
    # nn.Parameter(torch.randn(h, w, dim, 2) * 0.02).
    complex_weight = jax.random.normal(kw, (H, W // 2 + 1, C, 2), dtype=jnp.float32) * 0.02

    out = jax.block_until_ready(global_filter(x, complex_weight))

    # Reference with library FFTs (same semantics as torch.fft rfft2/irfft2 over
    # dims (1, 2), norm='ortho').
    w_c = complex_weight[..., 0] + 1j * complex_weight[..., 1]      # (H, Wf, C)
    xf = jnp.fft.rfft2(x, axes=(1, 2), norm="ortho")
    ref = jnp.fft.irfft2(xf * w_c[None], s=(H, W), axes=(1, 2), norm="ortho")

    assert out.shape == ref.shape and out.dtype == ref.dtype
    max_err = float(jnp.max(jnp.abs(out - ref)))
    assert max_err < 2e-3, f"max abs error too large: {max_err}"
    print("KERNEL_OK")
</pallas_src>

<mosaic_0001>
module attributes {stable_mosaic.version = 11 : i64} {
  func.func @_global_filter_kernel(%arg0: i32, %arg1: memref<1x196x16xf32, #tpu.memory_space<vmem>>, %arg2: memref<2x112x196xbf16, #tpu.memory_space<vmem>>, %arg3: memref<2x196x112xbf16, #tpu.memory_space<vmem>>, %arg4: memref<2x112x16xf32, #tpu.memory_space<vmem>>, %arg5: memref<1x196x16xf32, #tpu.memory_space<vmem>>) attributes {dimension_semantics = [#tpu.dimension_semantics<parallel>], iteration_bounds = array<i64: 2>, scalar_prefetch = 0 : i64, scratch_operands = 0 : i64, tpu.core_type = #tpu.core_type<tc>, window_params = [{transform_indices = @transform_0, window_bounds = array<i64: 1, 196, 16>}, {pipeline_mode = #tpu.pipeline_mode<synchronous>, transform_indices = @transform_1, window_bounds = array<i64: 2, 112, 196>}, {pipeline_mode = #tpu.pipeline_mode<synchronous>, transform_indices = @transform_2, window_bounds = array<i64: 2, 196, 112>}, {pipeline_mode = #tpu.pipeline_mode<synchronous>, transform_indices = @transform_3, window_bounds = array<i64: 2, 112, 16>}, {transform_indices = @transform_4, window_bounds = array<i64: 1, 196, 16>}]} {
    %c0 = arith.constant 0 : index
    %c0_0 = arith.constant 0 : index
    %c0_1 = arith.constant 0 : index
    %0 = vector.load %arg2[%c0, %c0_0, %c0_1] : memref<2x112x196xbf16, #tpu.memory_space<vmem>>, vector<1x112x196xbf16>
    %1 = vector.shape_cast %0 : vector<1x112x196xbf16> to vector<112x196xbf16>
    %c1 = arith.constant 1 : index
    %c0_2 = arith.constant 0 : index
    %c0_3 = arith.constant 0 : index
    %2 = vector.load %arg2[%c1, %c0_2, %c0_3] : memref<2x112x196xbf16, #tpu.memory_space<vmem>>, vector<1x112x196xbf16>
    %3 = vector.shape_cast %2 : vector<1x112x196xbf16> to vector<112x196xbf16>
    %c0_4 = arith.constant 0 : index
    %c0_5 = arith.constant 0 : index
    %c0_6 = arith.constant 0 : index
    %4 = vector.load %arg3[%c0_4, %c0_5, %c0_6] : memref<2x196x112xbf16, #tpu.memory_space<vmem>>, vector<1x196x112xbf16>
    %5 = vector.shape_cast %4 : vector<1x196x112xbf16> to vector<196x112xbf16>
    %c1_7 = arith.constant 1 : index
    %c0_8 = arith.constant 0 : index
    %c0_9 = arith.constant 0 : index
    %6 = vector.load %arg3[%c1_7, %c0_8, %c0_9] : memref<2x196x112xbf16, #tpu.memory_space<vmem>>, vector<1x196x112xbf16>
    %7 = vector.shape_cast %6 : vector<1x196x112xbf16> to vector<196x112xbf16>
    %c0_10 = arith.constant 0 : index
    %c0_11 = arith.constant 0 : index
    %c0_12 = arith.constant 0 : index
    %8 = vector.load %arg4[%c0_10, %c0_11, %c0_12] : memref<2x112x16xf32, #tpu.memory_space<vmem>>, vector<1x112x16xf32>
    %9 = vector.shape_cast %8 : vector<1x112x16xf32> to vector<112x16xf32>
    %c1_13 = arith.constant 1 : index
    %c0_14 = arith.constant 0 : index
    %c0_15 = arith.constant 0 : index
    %10 = vector.load %arg4[%c1_13, %c0_14, %c0_15] : memref<2x112x16xf32, #tpu.memory_space<vmem>>, vector<1x112x16xf32>
    %11 = vector.shape_cast %10 : vector<1x112x16xf32> to vector<112x16xf32>
    %c0_16 = arith.constant 0 : index
    %c0_17 = arith.constant 0 : index
    %c0_18 = arith.constant 0 : index
    %12 = vector.load %arg1[%c0_16, %c0_17, %c0_18] : memref<1x196x16xf32, #tpu.memory_space<vmem>>, vector<1x196x16xf32>
    %13 = vector.shape_cast %12 : vector<1x196x16xf32> to vector<196x16xf32>
    %14 = arith.truncf %13 : vector<196x16xf32> to vector<196x16xbf16>
    %cst = arith.constant dense<0.000000e+00> : vector<112x16xf32>
    %15 = tpu.matmul %1, %14, %cst {dimension_numbers = #tpu.dot_dimension_numbers<[1], [0], [0], [1], [0, 0, 1, 1], [], []>} : vector<112x196xbf16>, vector<196x16xbf16>, vector<112x16xf32> -> vector<112x16xf32>
    %cst_19 = arith.constant dense<0.000000e+00> : vector<112x16xf32>
    %16 = tpu.matmul %3, %14, %cst_19 {dimension_numbers = #tpu.dot_dimension_numbers<[1], [0], [0], [1], [0, 0, 1, 1], [], []>} : vector<112x196xbf16>, vector<196x16xbf16>, vector<112x16xf32> -> vector<112x16xf32>
    %17 = arith.mulf %15, %9 : vector<112x16xf32>
    %18 = arith.mulf %16, %11 : vector<112x16xf32>
    %19 = arith.subf %17, %18 : vector<112x16xf32>
    %20 = arith.truncf %19 : vector<112x16xf32> to vector<112x16xbf16>
    %21 = arith.mulf %15, %11 : vector<112x16xf32>
    %22 = arith.mulf %16, %9 : vector<112x16xf32>
    %23 = arith.addf %21, %22 : vector<112x16xf32>
    %24 = arith.truncf %23 : vector<112x16xf32> to vector<112x16xbf16>
    %cst_20 = arith.constant dense<0.000000e+00> : vector<196x16xf32>
    %25 = tpu.matmul %5, %20, %cst_20 {dimension_numbers = #tpu.dot_dimension_numbers<[1], [0], [0], [1], [0, 0, 1, 1], [], []>} : vector<196x112xbf16>, vector<112x16xbf16>, vector<196x16xf32> -> vector<196x16xf32>
    %cst_21 = arith.constant dense<0.000000e+00> : vector<196x16xf32>
    %26 = tpu.matmul %7, %24, %cst_21 {dimension_numbers = #tpu.dot_dimension_numbers<[1], [0], [0], [1], [0, 0, 1, 1], [], []>} : vector<196x112xbf16>, vector<112x16xbf16>, vector<196x16xf32> -> vector<196x16xf32>
    %27 = arith.subf %25, %26 : vector<196x16xf32>
    %c0_22 = arith.constant 0 : index
    %c0_23 = arith.constant 0 : index
    %c0_24 = arith.constant 0 : index
    %28 = vector.load %arg5[%c0_22, %c0_23, %c0_24] : memref<1x196x16xf32, #tpu.memory_space<vmem>>, vector<1x196x16xf32>
    %29 = vector.shape_cast %28 : vector<1x196x16xf32> to vector<196x16xf32>
    %30 = vector.shape_cast %27 : vector<196x16xf32> to vector<1x196x16xf32>
    tpu.vector_store %arg5[%c0_22, %c0_23, %c0_24], %30 {strides = array<i32>} : memref<1x196x16xf32, #tpu.memory_space<vmem>>, vector<1x196x16xf32>,
    return
  }
  func.func @transform_0(%arg0: i32) -> (i32, i32, i32) {
    %c0_i32 = arith.constant 0 : i32
    %c0_i32_0 = arith.constant 0 : i32
    %c0_i32_1 = arith.constant 0 : i32
    return %arg0, %c0_i32, %c0_i32_0 : i32, i32, i32
  }
  func.func @transform_1(%arg0: i32) -> (i32, i32, i32) {
    %c0_i32 = arith.constant 0 : i32
    %c0_i32_0 = arith.constant 0 : i32
    %c0_i32_1 = arith.constant 0 : i32
    %c0_i32_2 = arith.constant 0 : i32
    return %c0_i32, %c0_i32_0, %c0_i32_1 : i32, i32, i32
  }
  func.func @transform_2(%arg0: i32) -> (i32, i32, i32) {
    %c0_i32 = arith.constant 0 : i32
    %c0_i32_0 = arith.constant 0 : i32
    %c0_i32_1 = arith.constant 0 : i32
    %c0_i32_2 = arith.constant 0 : i32
    return %c0_i32, %c0_i32_0, %c0_i32_1 : i32, i32, i32
  }
  func.func @transform_3(%arg0: i32) -> (i32, i32, i32) {
    %c0_i32 = arith.constant 0 : i32
    %c0_i32_0 = arith.constant 0 : i32
    %c0_i32_1 = arith.constant 0 : i32
    %c0_i32_2 = arith.constant 0 : i32
    return %c0_i32, %c0_i32_0, %c0_i32_1 : i32, i32, i32
  }
  func.func @transform_4(%arg0: i32) -> (i32, i32, i32) {
    %c0_i32 = arith.constant 0 : i32
    %c0_i32_0 = arith.constant 0 : i32
    %c0_i32_1 = arith.constant 0 : i32
    return %arg0, %c0_i32, %c0_i32_0 : i32, i32, i32
  }
}

</mosaic_0001>

<llo_original>
// kernel: tpu_custom_call.1
$region0: #{tpu_custom_call.1}
  #allocation0 [shape = 'u32[]', space=smem, size = 0x4, offset = 0x4, fixed_abs, tag = 'smem constant byte address 0x4 - core index']
  #allocation1 [shape = 'u32[144,128]{1,0:T(1,128)}', space=vmem, size = 0x12000, scoped, tag = 'internal scratch']
  %s0 = inlined_call_operand.vmem [shape: f32[2,196,16], index: 0, kind: input, shape index: {}]
  %s1 = inlined_call_operand.vmem [shape: bf16[2,112,196], index: 1, kind: input, shape index: {}]
  %s2 = inlined_call_operand.vmem [shape: bf16[2,196,112], index: 2, kind: input, shape index: {}]
  %s3 = inlined_call_operand.vmem [shape: f32[2,112,16], index: 3, kind: input, shape index: {}]
  %s4 = inlined_call_operand.vmem [shape: f32[2,196,16], index: 4, kind: output, shape index: {}]
  %s5 = sld [smem:[#allocation0]]
  $region49: #{tpu_custom_call.1} parent=0
    _
  %s7 = ssub.s32 1, %s5
  %s8 = scalar_select 0, %s7, %s5
  loop: start=0, step=1, limit=4
  $region2: #{tpu_custom_call.1} parent=0 // loop_pre_header
    _
  $region3: #{tpu_custom_call.1} parent=0 // loop_header
    %s10 = sphi 0, %s14
    %p11 = scmp.ge.s32.totalorder %s10, 4
    %s20 = sphi 0, %s22
    %s23 = sphi 0, %s20
    %s24 = sphi 0, %s23
    %s40 = sphi 0, %s24
    %s44 = sphi 0, %s44
    %s46 = sphi 0, %s44
    %s47 = sphi 0, %s46
    %s61 = sphi 0, %s47
    %s65 = sphi 0, %s65
    %s67 = sphi 0, %s65
    %s68 = sphi 0, %s67
    %s82 = sphi 0, %s68
    %s86 = sphi 0, %s86
    %s88 = sphi 0, %s86
    %s89 = sphi 0, %s88
    %s103 = sphi 0, %s89
    %s109 = sphi 0, %s111
    %s112 = sphi 0, %s109
    %s113 = sphi 0, %s112
    %s129 = sphi 0, %s113
  $region4: #{tpu_custom_call.1} parent=0 // loop_header_branch
    %13 = sbr.rel (%p11) target = $region8
  $region5: #{tpu_custom_call.1} parent=0 // loop_body
    %s15 = ssub.s32 %s10, 1
    %s16 = ssub.s32 %s10, 2
    %s17 = sadd.s32 %s10, 1
    %s18 = ssub.s32 %s10, %s17
    %p19 = scmp.eq.s32.totalorder %s18, 0
    %s21 = sadd.s32 %s20, 1
    %s22 = scalar_select %p19, %s20, %s21
    %p25 = pneg %p19
    %p26 = scmp.eq.s32.totalorder %s10, 1
    %p27 = por %p25, %p26
    %p28 = scmp.ne.s32.totalorder %s20, %s23
    %p29 = scmp.eq.s32.totalorder %s10, 0
    %p30 = por %p28, %p29
    %p31 = scmp.ne.s32.totalorder %s20, %s23
    %p32 = scmp.eq.s32.totalorder %s15, 1
    %p33 = por %p31, %p32
    %p34 = scmp.ne.s32.totalorder %s23, %s24
    %p35 = scmp.eq.s32.totalorder %s15, 0
    %p36 = por %p34, %p35
    %p37 = scmp.ne.s32.totalorder %s23, %s24
    %p38 = scmp.eq.s32.totalorder %s16, 1
    %p39 = por %p37, %p38
    %p41 = scmp.ne.s32.totalorder %s24, %s40
    %p42 = scmp.eq.s32.totalorder %s16, 0
    %p43 = por %p41, %p42
    %s45 = sadd.s32 %s44, 1
    %p48 = scmp.eq.s32.totalorder %s10, 1
    %p49 = scmp.ne.s32.totalorder %s44, %s46
    %p50 = scmp.eq.s32.totalorder %s10, 0
    %p51 = por %p49, %p50
    %p52 = scmp.ne.s32.totalorder %s44, %s46
    %p53 = scmp.eq.s32.totalorder %s15, 1
    %p54 = por %p52, %p53
    %p55 = scmp.ne.s32.totalorder %s46, %s47
    %p56 = scmp.eq.s32.totalorder %s15, 0
    %p57 = por %p55, %p56
    %p58 = scmp.ne.s32.totalorder %s46, %s47
    %p59 = scmp.eq.s32.totalorder %s16, 1
    %p60 = por %p58, %p59
    %p62 = scmp.ne.s32.totalorder %s47, %s61
    %p63 = scmp.eq.s32.totalorder %s16, 0
    %p64 = por %p62, %p63
    %s66 = sadd.s32 %s65, 1
    %p69 = scmp.eq.s32.totalorder %s10, 1
    %p70 = scmp.ne.s32.totalorder %s65, %s67
    %p71 = scmp.eq.s32.totalorder %s10, 0
    %p72 = por %p70, %p71
    %p73 = scmp.ne.s32.totalorder %s65, %s67
    %p74 = scmp.eq.s32.totalorder %s15, 1
    %p75 = por %p73, %p74
    %p76 = scmp.ne.s32.totalorder %s67, %s68
    %p77 = scmp.eq.s32.totalorder %s15, 0
    %p78 = por %p76, %p77
    %p79 = scmp.ne.s32.totalorder %s67, %s68
    %p80 = scmp.eq.s32.totalorder %s16, 1
    %p81 = por %p79, %p80
    %p83 = scmp.ne.s32.totalorder %s68, %s82
    %p84 = scmp.eq.s32.totalorder %s16, 0
    %p85 = por %p83, %p84
    %s87 = sadd.s32 %s86, 1
    %p90 = scmp.eq.s32.totalorder %s10, 1
    %p91 = scmp.ne.s32.totalorder %s86, %s88
    %p92 = scmp.eq.s32.totalorder %s10, 0
    %p93 = por %p91, %p92
    %p94 = scmp.ne.s32.totalorder %s86, %s88
    %p95 = scmp.eq.s32.totalorder %s15, 1
    %p96 = por %p94, %p95
    %p97 = scmp.ne.s32.totalorder %s88, %s89
    %p98 = scmp.eq.s32.totalorder %s15, 0
    %p99 = por %p97, %p98
    %p100 = scmp.ne.s32.totalorder %s88, %s89
    %p101 = scmp.eq.s32.totalorder %s16, 1
    %p102 = por %p100, %p101
    %p104 = scmp.ne.s32.totalorder %s89, %s103
    %p105 = scmp.eq.s32.totalorder %s16, 0
    %p106 = por %p104, %p105
    %s107 = ssub.s32 %s10, %s17
    %p108 = scmp.eq.s32.totalorder %s107, 0
    %s110 = sadd.s32 %s109, 1
    %s111 = scalar_select %p108, %s109, %s110
    %p114 = pneg %p108
    %p115 = scmp.eq.s32.totalorder %s10, 1
    %p116 = por %p114, %p115
    %p117 = scmp.ne.s32.totalorder %s109, %s112
    %p118 = scmp.eq.s32.totalorder %s10, 0
    %p119 = por %p117, %p118
    %p120 = scmp.ne.s32.totalorder %s109, %s112
    %p121 = scmp.eq.s32.totalorder %s15, 1
    %p122 = por %p120, %p121
    %p123 = scmp.ne.s32.totalorder %s112, %s113
    %p124 = scmp.eq.s32.totalorder %s15, 0
    %p125 = por %p123, %p124
    %p126 = scmp.ne.s32.totalorder %s112, %s113
    %p127 = scmp.eq.s32.totalorder %s16, 1
    %p128 = por %p126, %p127
    %p130 = scmp.ne.s32.totalorder %s113, %s129
    %p131 = scmp.eq.s32.totalorder %s16, 0
    %p132 = por %p130, %p131
    %p133 = scmp.le.s32.totalorder 1, %s10
    %p134 = scmp.lt.s32.totalorder %s10, 3
    %p135 = pnand %p133, %p134
    %p136 = pneg %p135
    // Predicated region
    $region9: #{tpu_custom_call.1} parent=5 // pred_check
      _
    $region10: #{tpu_custom_call.1} parent=5 // pred_check_branch
      %138 = sbr.rel (%p135) target = $region12
    $region11: #{tpu_custom_call.1} parent=5 // pred_region
      %s139 = ssub.s32 %s10, 1
      // Predicated region
      $region13: #{tpu_custom_call.1} parent=11 // pred_check
        %p140 = pneg %p57
      $region14: #{tpu_custom_call.1} parent=11 // pred_check_branch
        %142 = sbr.rel (%p140) target = $region16
      $region15: #{tpu_custom_call.1} parent=11 // pred_region
        _
      $region16: #{tpu_custom_call.1} parent=11 // pred_fallthru
        _
      // Predicated region
      $region17: #{tpu_custom_call.1} parent=11 // pred_check
        %p143 = pneg %p78
      $region18: #{tpu_custom_call.1} parent=11 // pred_check_branch
        %145 = sbr.rel (%p143) target = $region20
      $region19: #{tpu_custom_call.1} parent=11 // pred_region
        _
      $region20: #{tpu_custom_call.1} parent=11 // pred_fallthru
        _
      // Predicated region
      $region21: #{tpu_custom_call.1} parent=11 // pred_check
        %p146 = pneg %p99
      $region22: #{tpu_custom_call.1} parent=11 // pred_check_branch
        %148 = sbr.rel (%p146) target = $region24
      $region23: #{tpu_custom_call.1} parent=11 // pred_region
        _
      $region24: #{tpu_custom_call.1} parent=11 // pred_fallthru
        _
    $region12: #{tpu_custom_call.1} parent=5 // pred_fallthru
      _
    %p149 = scmp.lt.s32.totalorder %s10, 2
    // Predicated region
    $region25: #{tpu_custom_call.1} parent=5 // pred_check
      %p150 = pneg %p149
    $region26: #{tpu_custom_call.1} parent=5 // pred_check_branch
      %152 = sbr.rel (%p150) target = $region28
    $region27: #{tpu_custom_call.1} parent=5 // pred_region
      // Predicated region
      $region29: #{tpu_custom_call.1} parent=27 // pred_check
        %p153 = pneg %p30
      $region30: #{tpu_custom_call.1} parent=27 // pred_check_branch
        %155 = sbr.rel (%p153) target = $region32
      $region31: #{tpu_custom_call.1} parent=27 // pred_region
        %p156 = scmp.lt.s32.totalorder %s10, 1
        %s157 = scalar_select %p156, %s10, 1
        %s158 = smul.addr %s157, 25
        %s159 = smul.addr %s158, 8
        %s160 = scalar_lea.vmem %s0, %s159
      $region32: #{tpu_custom_call.1} parent=27 // pred_fallthru
        _
    $region28: #{tpu_custom_call.1} parent=5 // pred_fallthru
      _
    %p161 = scmp.le.s32.totalorder 1, %s10
    %p162 = scmp.lt.s32.totalorder %s10, 3
    %p163 = pnand %p161, %p162
    %p164 = pneg %p163
    // Predicated region
    $region33: #{tpu_custom_call.1} parent=5 // pred_check
      _
    $region34: #{tpu_custom_call.1} parent=5 // pred_check_branch
      %166 = sbr.rel (%p163) target = $region36
    $region35: #{tpu_custom_call.1} parent=5 // pred_region
      %s167 = ssub.s32 %s10, 1
      %p168 = scmp.lt.s32.totalorder %s15, 1
      %s169 = scalar_select %p168, %s15, 1
      %s170 = smul.addr %s169, 25
      %s171 = smul.addr %s170, 8
      %s172 = scalar_lea.vmem %s0, %s171
      %p173 = pneg %p36
      %p174 = pneg %p33
      %p175 = pneg %p57
      %p176 = pneg %p54
      %p177 = pneg %p78
      %p178 = pneg %p75
      %p179 = pneg %p99
      %p180 = pneg %p96
      %p181 = pneg %p125
      %p182 = pneg %p122
      %p183 = scmp.lt.s32.totalorder %s15, 1
      %s184 = scalar_select %p183, %s15, 1
      %s185 = smul.addr %s184, 25
      %s186 = smul.addr %s185, 8
      %s187 = scalar_lea.vmem %s4, %s186
      %p188 = scmp.lt.s32.totalorder %s15, 1
      %s189 = scalar_select %p188, %s15, 1
      %s190 = smul.addr %s189, 25
      %s191 = smul.addr %s190, 8
      %s192 = scalar_lea.vmem %s0, %s191
      %p193 = scmp.lt.s32.totalorder %s15, 1
      %s194 = scalar_select %p193, %s15, 1
      %s195 = smul.addr %s194, 25
      %s196 = smul.addr %s195, 8
      %s197 = scalar_lea.vmem %s4, %s196
      %v199 = vld [vmem:[%s1] sm:$0xff]
      %v200 = vld [vmem:[%s1 + $0x8] sm:$0xff]
      %v201 = vld [vmem:[%s1 + $0x10] sm:$0xff]
      %v202 = vld [vmem:[%s1 + $0x18] sm:$0xff]
      %v203 = vld [vmem:[%s1 + $0x20] sm:$0xff]
      %v204 = vld [vmem:[%s1 + $0x28] sm:$0xff]
      %v205 = vld [vmem:[%s1 + $0x30] sm:$0xff]
      %v206 = vld [vmem:[%s1 + $0x38] sm:$0xff]
      %v207 = vld [vmem:[%s1 + $0x40] sm:$0xff]
      %v208 = vld [vmem:[%s1 + $0x48] sm:$0xff]
      %v209 = vld [vmem:[%s1 + $0x50] sm:$0xff]
      %v210 = vld [vmem:[%s1 + $0x58] sm:$0xff]
      %v211 = vld [vmem:[%s1 + $0x60] sm:$0xff]
      %v212 = vld [vmem:[%s1 + $0x68] sm:$0xff]
      %s213 = scalar_lea.vmem %s1, 112
      %v214 = vld [vmem:[%s213] sm:$0xff]
      %v215 = vld [vmem:[%s213 + $0x8] sm:$0xff]
      %v216 = vld [vmem:[%s213 + $0x10] sm:$0xff]
      %v217 = vld [vmem:[%s213 + $0x18] sm:$0xff]
      %v218 = vld [vmem:[%s213 + $0x20] sm:$0xff]
      %v219 = vld [vmem:[%s213 + $0x28] sm:$0xff]
      %v220 = vld [vmem:[%s213 + $0x30] sm:$0xff]
      %v221 = vld [vmem:[%s213 + $0x38] sm:$0xff]
      %v222 = vld [vmem:[%s213 + $0x40] sm:$0xff]
      %v223 = vld [vmem:[%s213 + $0x48] sm:$0xff]
      %v224 = vld [vmem:[%s213 + $0x50] sm:$0xff]
      %v225 = vld [vmem:[%s213 + $0x58] sm:$0xff]
      %v226 = vld [vmem:[%s213 + $0x60] sm:$0xff]
      %v227 = vld [vmem:[%s213 + $0x68] sm:$0xff]
      %v228 = vld [vmem:[%s2] sm:$0xf]
      %v229 = vld [vmem:[%s2 + $0x4] sm:$0xf]
      %v230 = vld [vmem:[%s2 + $0x8] sm:$0xf]
      %v231 = vld [vmem:[%s2 + $0xc] sm:$0xf]
      %v232 = vld [vmem:[%s2 + $0x10] sm:$0xf]
      %v233 = vld [vmem:[%s2 + $0x14] sm:$0xf]
      %v234 = vld [vmem:[%s2 + $0x18] sm:$0xf]
      %v235 = vld [vmem:[%s2 + $0x1c] sm:$0xf]
      %v236 = vld [vmem:[%s2 + $0x20] sm:$0xf]
      %v237 = vld [vmem:[%s2 + $0x24] sm:$0xf]
      %v238 = vld [vmem:[%s2 + $0x28] sm:$0xf]
      %v239 = vld [vmem:[%s2 + $0x2c] sm:$0xf]
      %v240 = vld [vmem:[%s2 + $0x30] sm:$0xf]
      %v241 = vld [vmem:[%s2 + $0x34] sm:$0xf]
      %v242 = vld [vmem:[%s2 + $0x38] sm:$0xf]
      %v243 = vld [vmem:[%s2 + $0x3c] sm:$0xf]
      %v244 = vld [vmem:[%s2 + $0x40] sm:$0xf]
      %v245 = vld [vmem:[%s2 + $0x44] sm:$0xf]
      %v246 = vld [vmem:[%s2 + $0x48] sm:$0xf]
      %v247 = vld [vmem:[%s2 + $0x4c] sm:$0xf]
      %v248 = vld [vmem:[%s2 + $0x50] sm:$0xf]
      %v249 = vld [vmem:[%s2 + $0x54] sm:$0xf]
      %v250 = vld [vmem:[%s2 + $0x58] sm:$0xf]
      %v251 = vld [vmem:[%s2 + $0x5c] sm:$0xf]
      %v252 = vld [vmem:[%s2 + $0x60] sm:$0x3]
      %s253 = scalar_lea.vmem %s2, 100
      %v254 = vld [vmem:[%s253] sm:$0xf]
      %v255 = vld [vmem:[%s253 + $0x4] sm:$0xf]
      %v256 = vld [vmem:[%s253 + $0x8] sm:$0xf]
      %v257 = vld [vmem:[%s253 + $0xc] sm:$0xf]
      %v258 = vld [vmem:[%s253 + $0x10] sm:$0xf]
      %v259 = vld [vmem:[%s253 + $0x14] sm:$0xf]
      %v260 = vld [vmem:[%s253 + $0x18] sm:$0xf]
      %v261 = vld [vmem:[%s253 + $0x1c] sm:$0xf]
      %v262 = vld [vmem:[%s253 + $0x20] sm:$0xf]
      %v263 = vld [vmem:[%s253 + $0x24] sm:$0xf]
      %v264 = vld [vmem:[%s253 + $0x28] sm:$0xf]
      %v265 = vld [vmem:[%s253 + $0x2c] sm:$0xf]
      %v266 = vld [vmem:[%s253 + $0x30] sm:$0xf]
      %v267 = vld [vmem:[%s253 + $0x34] sm:$0xf]
      %v268 = vld [vmem:[%s253 + $0x38] sm:$0xf]
      %v269 = vld [vmem:[%s253 + $0x3c] sm:$0xf]
      %v270 = vld [vmem:[%s253 + $0x40] sm:$0xf]
      %v271 = vld [vmem:[%s253 + $0x44] sm:$0xf]
      %v272 = vld [vmem:[%s253 + $0x48] sm:$0xf]
      %v273 = vld [vmem:[%s253 + $0x4c] sm:$0xf]
      %v274 = vld [vmem:[%s253 + $0x50] sm:$0xf]
      %v275 = vld [vmem:[%s253 + $0x54] sm:$0xf]
      %v276 = vld [vmem:[%s253 + $0x58] sm:$0xf]
      %v277 = vld [vmem:[%s253 + $0x5c] sm:$0xf]
      %v278 = vld [vmem:[%s253 + $0x60] sm:$0x3]
      %v279 = vld [vmem:[%s3] sm:$0xff]
      %v280 = vld [vmem:[%s3 + $0x8] sm:$0xff]
      %v281 = vld [vmem:[%s3 + $0x10] sm:$0xff]
      %v282 = vld [vmem:[%s3 + $0x18] sm:$0xff]
      %v283 = vld [vmem:[%s3 + $0x20] sm:$0xff]
      %v284 = vld [vmem:[%s3 + $0x28] sm:$0xff]
      %v285 = vld [vmem:[%s3 + $0x30] sm:$0xff]
      %v286 = vld [vmem:[%s3 + $0x38] sm:$0xff]
      %v287 = vld [vmem:[%s3 + $0x40] sm:$0xff]
      %v288 = vld [vmem:[%s3 + $0x48] sm:$0xff]
      %v289 = vld [vmem:[%s3 + $0x50] sm:$0xff]
      %v290 = vld [vmem:[%s3 + $0x58] sm:$0xff]
      %v291 = vld [vmem:[%s3 + $0x60] sm:$0xff]
      %v292 = vld [vmem:[%s3 + $0x68] sm:$0xff]
      %s293 = scalar_lea.vmem %s3, 112
      %v294 = vld [vmem:[%s293] sm:$0xff]
      %v295 = vld [vmem:[%s293 + $0x8] sm:$0xff]
      %v296 = vld [vmem:[%s293 + $0x10] sm:$0xff]
      %v297 = vld [vmem:[%s293 + $0x18] sm:$0xff]
      %v298 = vld [vmem:[%s293 + $0x20] sm:$0xff]
      %v299 = vld [vmem:[%s293 + $0x28] sm:$0xff]
      %v300 = vld [vmem:[%s293 + $0x30] sm:$0xff]
      %v301 = vld [vmem:[%s293 + $0x38] sm:$0xff]
      %v302 = vld [vmem:[%s293 + $0x40] sm:$0xff]
      %v303 = vld [vmem:[%s293 + $0x48] sm:$0xff]
      %v304 = vld [vmem:[%s293 + $0x50] sm:$0xff]
      %v305 = vld [vmem:[%s293 + $0x58] sm:$0xff]
      %v306 = vld [vmem:[%s293 + $0x60] sm:$0xff]
      %v307 = vld [vmem:[%s293 + $0x68] sm:$0xff]
      %v308 = vld [vmem:[%s192] sm:$0xff]
      %v309 = vld [vmem:[%s192 + $0x8] sm:$0xff]
      %v310 = vld [vmem:[%s192 + $0x10] sm:$0xff]
      %v311 = vld [vmem:[%s192 + $0x18] sm:$0xff]
      %v312 = vld [vmem:[%s192 + $0x20] sm:$0xff]
      %v313 = vld [vmem:[%s192 + $0x28] sm:$0xff]
      %v314 = vld [vmem:[%s192 + $0x30] sm:$0xff]
      %v315 = vld [vmem:[%s192 + $0x38] sm:$0xff]
      %v316 = vld [vmem:[%s192 + $0x40] sm:$0xff]
      %v317 = vld [vmem:[%s192 + $0x48] sm:$0xff]
      %v318 = vld [vmem:[%s192 + $0x50] sm:$0xff]
      %v319 = vld [vmem:[%s192 + $0x58] sm:$0xff]
      %v320 = vld [vmem:[%s192 + $0x60] sm:$0xff]
      %v321 = vld [vmem:[%s192 + $0x68] sm:$0xff]
      %v322 = vld [vmem:[%s192 + $0x70] sm:$0xff]
      %v323 = vld [vmem:[%s192 + $0x78] sm:$0xff]
      %v324 = vld [vmem:[%s192 + $0x80] sm:$0xff]
      %v325 = vld [vmem:[%s192 + $0x88] sm:$0xff]
      %v326 = vld [vmem:[%s192 + $0x90] sm:$0xff]
      %v327 = vld [vmem:[%s192 + $0x98] sm:$0xff]
      %v328 = vld [vmem:[%s192 + $0xa0] sm:$0xff]
      %v329 = vld [vmem:[%s192 + $0xa8] sm:$0xff]
      %v330 = vld [vmem:[%s192 + $0xb0] sm:$0xff]
      %v331 = vld [vmem:[%s192 + $0xb8] sm:$0xff]
      %v332 = vld [vmem:[%s192 + $0xc0] sm:$0xf]
      %v333 = vpack.c.bf16 %v309, %v308
      %v334 = vpack.c.bf16 %v311, %v310
      %v335 = vpack.c.bf16 %v313, %v312
      %v336 = vpack.c.bf16 %v315, %v314
      %v337 = vpack.c.bf16 %v317, %v316
      %v338 = vpack.c.bf16 %v319, %v318
      %v339 = vpack.c.bf16 %v321, %v320
      %v340 = vpack.c.bf16 %v323, %v322
      %v341 = vpack.c.bf16 %v325, %v324
      %v342 = vpack.c.bf16 %v327, %v326
      %v343 = vpack.c.bf16 %v329, %v328
      %v344 = vpack.c.bf16 %v331, %v330
      %v345 = vpack.c.bf16 %v332, %v332
      %v360 = vunpack.c.l.b16 %v199
      %v361 = vunpack.c.h.b16 %v199
      %v362 = vunpack.c.l.b16 %v200
      %v363 = vunpack.c.h.b16 %v200
      %v364 = vunpack.c.l.b16 %v201
      %v365 = vunpack.c.h.b16 %v201
      %v366 = vunpack.c.l.b16 %v202
      %v367 = vunpack.c.h.b16 %v202
      %v368 = vunpack.c.l.b16 %v203
      %v369 = vunpack.c.h.b16 %v203
      %v370 = vunpack.c.l.b16 %v204
      %v371 = vunpack.c.h.b16 %v204
      %v372 = vunpack.c.l.b16 %v205
      %v373 = vunpack.c.h.b16 %v205
      %v374 = vunpack.c.l.b16 %v206
      %v375 = vunpack.c.h.b16 %v206
      %v376 = vunpack.c.l.b16 %v207
      %v377 = vunpack.c.h.b16 %v207
      %v378 = vunpack.c.l.b16 %v208
      %v379 = vunpack.c.h.b16 %v208
      %v380 = vunpack.c.l.b16 %v209
      %v381 = vunpack.c.h.b16 %v209
      %v382 = vunpack.c.l.b16 %v210
      %v383 = vunpack.c.h.b16 %v210
      %v384 = vunpack.c.l.b16 %v211
      %v385 = vunpack.c.h.b16 %v211
      %v386 = vunpack.c.l.b16 %v212
      %v387 = vunpack.c.h.b16 %v212
      %v388 = vpack.c.b16 %v362, %v360
      %v389 = vpack.c.b16 %v363, %v361
      %v390 = vpack.c.b16 %v366, %v364
      %v391 = vpack.c.b16 %v367, %v365
      %v392 = vpack.c.b16 %v370, %v368
      %v393 = vpack.c.b16 %v371, %v369
      %v394 = vpack.c.b16 %v374, %v372
      %v395 = vpack.c.b16 %v375, %v373
      %v396 = vpack.c.b16 %v378, %v376
      %v397 = vpack.c.b16 %v379, %v377
      %v398 = vpack.c.b16 %v382, %v380
      %v399 = vpack.c.b16 %v383, %v381
      %v400 = vpack.c.b16 %v386, %v384
      %v401 = vpack.c.b16 %v387, %v385
      %vm409 = vcmask 556032
      %v411 = vsel %vm409, %v389, 0
      %v414 = vsel %vm409, %v391, 0
      %v417 = vsel %vm409, %v393, 0
      %v420 = vsel %vm409, %v395, 0
      %v423 = vsel %vm409, %v397, 0
      %v426 = vsel %vm409, %v399, 0
      %v429 = vsel %vm409, %v401, 0
      %vm431 = vcmask 1041408
      %v433 = vsel %vm431, %v345, 0
      %435 = vmatprep.subr.bf16.mxu0 0
      %436 = vmatpush1.bf16.msra.mxu0 %v333
      %437 = vmatprep.subr.bf16.mxu0 0
      %438 = vmatpush1.bf16.msra.mxu0 %v334
      %439 = vmatprep.subr.bf16.mxu0 0
      %440 = vmatpush1.bf16.msra.mxu0 %v335
      %441 = vmatprep.subr.bf16.mxu0 0
      %442 = vmatpush1.bf16.msra.mxu0 %v336
      %443 = vmatprep.subr.bf16.mxu0 0
      %444 = vmatpush1.bf16.msra.mxu0 %v337
      %445 = vmatprep.subr.bf16.mxu0 0
      %446 = vmatpush1.bf16.msra.mxu0 %v338
      %447 = vmatprep.subr.bf16.mxu0 0
      %448 = vmatpush1.bf16.msra.mxu0 %v339
      %449 = vmatprep.subr.bf16.mxu0 0
      %450 = vmatpush1.bf16.msra.mxu0 %v340
      %451 = vmatprep.subr.bf16.mxu0 0
      %452 = vmatpush1.bf16.msra.mxu0 %v341
      %453 = vmatprep.subr.bf16.mxu0 0
      %454 = vmatpush1.bf16.msra.mxu0 %v342
      %455 = vmatprep.subr.bf16.mxu0 0
      %456 = vmatpush1.bf16.msra.mxu0 %v343
      %457 = vmatprep.subr.bf16.mxu0 0
      %458 = vmatpush1.bf16.msra.mxu0 %v344
      %459 = vmatprep.subr.bf16.mxu0 0
      %460 = vmatpush1.bf16.msra.mxu0 %v433
      %461 = vmatprep.subr.bf16.mxu0 0
      %462 = vmatpush1.bf16.msra.mxu0 0
      %463 = vmatprep.subr.bf16.mxu0 0
      %464 = vmatpush1.bf16.msra.mxu0 0
      %465 = vmatprep.subr.bf16.mxu0 0
      %466 = vmatpush1.bf16.msra.mxu0 0
      %467 = vmatprep.mubr.bf16.mxu0 %v411
      %468 = vmatmul.mubr.bf16.gmra.mrb[0].mxu0 %v388
      %v469 = vpop.f32.mrb[0].mxu0
      %v470 = vadd.f32 0.0, %v469
      %v471 = vpop.f32.mrb[0].mxu0
      %v472 = vpop.f32.mrb[0].mxu0
      %v473 = vadd.f32 0.0, %v472
      %v474 = vpop.f32.mrb[0].mxu0
      %475 = vmatprep.mubr.bf16.mxu0 %v414
      %476 = vmatmul.mubr.bf16.gmra.mrb[0].mxu0 %v390
      %v477 = vpop.f32.mrb[0].mxu0
      %v478 = vadd.f32 0.0, %v477
      %v479 = vpop.f32.mrb[0].mxu0
      %v480 = vpop.f32.mrb[0].mxu0
      %v481 = vadd.f32 0.0, %v480
      %v482 = vpop.f32.mrb[0].mxu0
      %483 = vmatprep.mubr.bf16.mxu0 %v417
      %484 = vmatmul.mubr.bf16.gmra.mrb[0].mxu0 %v392
      %v485 = vpop.f32.mrb[0].mxu0
      %v486 = vadd.f32 0.0, %v485
      %v487 = vpop.f32.mrb[0].mxu0
      %v488 = vpop.f32.mrb[0].mxu0
      %v489 = vadd.f32 0.0, %v488
      %v490 = vpop.f32.mrb[0].mxu0
      %491 = vmatprep.mubr.bf16.mxu0 %v420
      %492 = vmatmul.mubr.bf16.gmra.mrb[0].mxu0 %v394
      %v493 = vpop.f32.mrb[0].mxu0
      %v494 = vadd.f32 0.0, %v493
      %v495 = vpop.f32.mrb[0].mxu0
      %v496 = vpop.f32.mrb[0].mxu0
      %v497 = vadd.f32 0.0, %v496
      %v498 = vpop.f32.mrb[0].mxu0
      %499 = vmatprep.mubr.bf16.mxu0 %v423
      %500 = vmatmul.mubr.bf16.gmra.mrb[0].mxu0 %v396
      %v501 = vpop.f32.mrb[0].mxu0
      %v502 = vadd.f32 0.0, %v501
      %v503 = vpop.f32.mrb[0].mxu0
      %v504 = vpop.f32.mrb[0].mxu0
      %v505 = vadd.f32 0.0, %v504
      %v506 = vpop.f32.mrb[0].mxu0
      %507 = vmatprep.mubr.bf16.mxu0 %v426
      %508 = vmatmul.mubr.bf16.gmra.mrb[0].mxu0 %v398
      %v509 = vpop.f32.mrb[0].mxu0
      %v510 = vadd.f32 0.0, %v509
      %v511 = vpop.f32.mrb[0].mxu0
      %v512 = vpop.f32.mrb[0].mxu0
      %v513 = vadd.f32 0.0, %v512
      %v514 = vpop.f32.mrb[0].mxu0
      %515 = vmatprep.mubr.bf16.mxu0 %v429
      %516 = vmatmul.mubr.bf16.gmra.mrb[0].mxu0 %v400
      %v517 = vpop.f32.mrb[0].mxu0
      %v518 = vadd.f32 0.0, %v517
      %v519 = vpop.f32.mrb[0].mxu0
      %v520 = vpop.f32.mrb[0].mxu0
      %v521 = vadd.f32 0.0, %v520
      %v522 = vpop.f32.mrb[0].mxu0
      %523 = vdwg.mxu0
      %v538 = vunpack.c.l.b16 %v214
      %v539 = vunpack.c.h.b16 %v214
      %v540 = vunpack.c.l.b16 %v215
      %v541 = vunpack.c.h.b16 %v215
      %v542 = vunpack.c.l.b16 %v216
      %v543 = vunpack.c.h.b16 %v216
      %v544 = vunpack.c.l.b16 %v217
      %v545 = vunpack.c.h.b16 %v217
      %v546 = vunpack.c.l.b16 %v218
      %v547 = vunpack.c.h.b16 %v218
      %v548 = vunpack.c.l.b16 %v219
      %v549 = vunpack.c.h.b16 %v219
      %v550 = vunpack.c.l.b16 %v220
      %v551 = vunpack.c.h.b16 %v220
      %v552 = vunpack.c.l.b16 %v221
      %v553 = vunpack.c.h.b16 %v221
      %v554 = vunpack.c.l.b16 %v222
      %v555 = vunpack.c.h.b16 %v222
      %v556 = vunpack.c.l.b16 %v223
      %v557 = vunpack.c.h.b16 %v223
      %v558 = vunpack.c.l.b16 %v224
      %v559 = vunpack.c.h.b16 %v224
      %v560 = vunpack.c.l.b16 %v225
      %v561 = vunpack.c.h.b16 %v225
      %v562 = vunpack.c.l.b16 %v226
      %v563 = vunpack.c.h.b16 %v226
      %v564 = vunpack.c.l.b16 %v227
      %v565 = vunpack.c.h.b16 %v227
      %v566 = vpack.c.b16 %v540, %v538
      %v567 = vpack.c.b16 %v541, %v539
      %v568 = vpack.c.b16 %v544, %v542
      %v569 = vpack.c.b16 %v545, %v543
      %v570 = vpack.c.b16 %v548, %v546
      %v571 = vpack.c.b16 %v549, %v547
      %v572 = vpack.c.b16 %v552, %v550
      %v573 = vpack.c.b16 %v553, %v551
      %v574 = vpack.c.b16 %v556, %v554
      %v575 = vpack.c.b16 %v557, %v555
      %v576 = vpack.c.b16 %v560, %v558
      %v577 = vpack.c.b16 %v561, %v559
      %v578 = vpack.c.b16 %v564, %v562
      %v579 = vpack.c.b16 %v565, %v563
      %v588 = vsel %vm409, %v567, 0
      %v591 = vsel %vm409, %v569, 0
      %v594 = vsel %vm409, %v571, 0
      %v597 = vsel %vm409, %v573, 0
      %v600 = vsel %vm409, %v575, 0
      %v603 = vsel %vm409, %v577, 0
      %v606 = vsel %vm409, %v579, 0
      %608 = vmatprep.subr.bf16.mxu0 0
      %609 = vmatpush1.bf16.msra.mxu0 %v333
      %610 = vmatprep.subr.bf16.mxu0 0
      %611 = vmatpush1.bf16.msra.mxu0 %v334
      %612 = vmatprep.subr.bf16.mxu0 0
      %613 = vmatpush1.bf16.msra.mxu0 %v335
      %614 = vmatprep.subr.bf16.mxu0 0
      %615 = vmatpush1.bf16.msra.mxu0 %v336
      %616 = vmatprep.subr.bf16.mxu0 0
      %617 = vmatpush1.bf16.msra.mxu0 %v337
      %618 = vmatprep.subr.bf16.mxu0 0
      %619 = vmatpush1.bf16.msra.mxu0 %v338
      %620 = vmatprep.subr.bf16.mxu0 0
      %621 = vmatpush1.bf16.msra.mxu0 %v339
      %622 = vmatprep.subr.bf16.mxu0 0
      %623 = vmatpush1.bf16.msra.mxu0 %v340
      %624 = vmatprep.subr.bf16.mxu0 0
      %625 = vmatpush1.bf16.msra.mxu0 %v341
      %626 = vmatprep.subr.bf16.mxu0 0
      %627 = vmatpush1.bf16.msra.mxu0 %v342
      %628 = vmatprep.subr.bf16.mxu0 0
      %629 = vmatpush1.bf16.msra.mxu0 %v343
      %630 = vmatprep.subr.bf16.mxu0 0
      %631 = vmatpush1.bf16.msra.mxu0 %v344
      %632 = vmatprep.subr.bf16.mxu0 0
      %633 = vmatpush1.bf16.msra.mxu0 %v433
      %634 = vmatprep.subr.bf16.mxu0 0
      %635 = vmatpush1.bf16.msra.mxu0 0
      %636 = vmatprep.subr.bf16.mxu0 0
      %637 = vmatpush1.bf16.msra.mxu0 0
      %638 = vmatprep.subr.bf16.mxu0 0
      %639 = vmatpush1.bf16.msra.mxu0 0
      %640 = vmatprep.mubr.bf16.mxu0 %v588
      %641 = vmatmul.mubr.bf16.gmra.mrb[0].mxu0 %v566
      %v642 = vpop.f32.mrb[0].mxu0
      %v643 = vadd.f32 0.0, %v642
      %v644 = vpop.f32.mrb[0].mxu0
      %v645 = vpop.f32.mrb[0].mxu0
      %v646 = vadd.f32 0.0, %v645
      %v647 = vpop.f32.mrb[0].mxu0
      %648 = vmatprep.mubr.bf16.mxu0 %v591
      %649 = vmatmul.mubr.bf16.gmra.mrb[0].mxu0 %v568
      %v650 = vpop.f32.mrb[0].mxu0
      %v651 = vadd.f32 0.0, %v650
      %v652 = vpop.f32.mrb[0].mxu0
      %v653 = vpop.f32.mrb[0].mxu0
      %v654 = vadd.f32 0.0, %v653
      %v655 = vpop.f32.mrb[0].mxu0
      %656 = vmatprep.mubr.bf16.mxu0 %v594
      %657 = vmatmul.mubr.bf16.gmra.mrb[0].mxu0 %v570
      %v658 = vpop.f32.mrb[0].mxu0
      %v659 = vadd.f32 0.0, %v658
      %v660 = vpop.f32.mrb[0].mxu0
      %v661 = vpop.f32.mrb[0].mxu0
      %v662 = vadd.f32 0.0, %v661
      %v663 = vpop.f32.mrb[0].mxu0
      %664 = vmatprep.mubr.bf16.mxu0 %v597
      %665 = vmatmul.mubr.bf16.gmra.mrb[0].mxu0 %v572
      %v666 = vpop.f32.mrb[0].mxu0
      %v667 = vadd.f32 0.0, %v666
      %v668 = vpop.f32.mrb[0].mxu0
      %v669 = vpop.f32.mrb[0].mxu0
      %v670 = vadd.f32 0.0, %v669
      %v671 = vpop.f32.mrb[0].mxu0
      %672 = vmatprep.mubr.bf16.mxu0 %v600
      %673 = vmatmul.mubr.bf16.gmra.mrb[0].mxu0 %v574
      %v674 = vpop.f32.mrb[0].mxu0
      %v675 = vadd.f32 0.0, %v674
      %v676 = vpop.f32.mrb[0].mxu0
      %v677 = vpop.f32.mrb[0].mxu0
      %v678 = vadd.f32 0.0, %v677
      %v679 = vpop.f32.mrb[0].mxu0
      %680 = vmatprep.mubr.bf16.mxu0 %v603
      %681 = vmatmul.mubr.bf16.gmra.mrb[0].mxu0 %v576
      %v682 = vpop.f32.mrb[0].mxu0
      %v683 = vadd.f32 0.0, %v682
      %v684 = vpop.f32.mrb[0].mxu0
      %v685 = vpop.f32.mrb[0].mxu0
      %v686 = vadd.f32 0.0, %v685
      %v687 = vpop.f32.mrb[0].mxu0
      %688 = vmatprep.mubr.bf16.mxu0 %v606
      %689 = vmatmul.mubr.bf16.gmra.mrb[0].mxu0 %v578
      %v690 = vpop.f32.mrb[0].mxu0
      %v691 = vadd.f32 0.0, %v690
      %v692 = vpop.f32.mrb[0].mxu0
      %v693 = vpop.f32.mrb[0].mxu0
      %v694 = vadd.f32 0.0, %v693
      %v695 = vpop.f32.mrb[0].mxu0
      %696 = vdwg.mxu0
      %v697 = vmul.f32 %v470, %v279
      %v698 = vmul.f32 %v473, %v280
      %v699 = vmul.f32 %v478, %v281
      %v700 = vmul.f32 %v481, %v282
      %v701 = vmul.f32 %v486, %v283
      %v702 = vmul.f32 %v489, %v284
      %v703 = vmul.f32 %v494, %v285
      %v704 = vmul.f32 %v497, %v286
      %v705 = vmul.f32 %v502, %v287
      %v706 = vmul.f32 %v505, %v288
      %v707 = vmul.f32 %v510, %v289
      %v708 = vmul.f32 %v513, %v290
      %v709 = vmul.f32 %v518, %v291
      %v710 = vmul.f32 %v521, %v292
      %v711 = vmul.f32 %v643, %v294
      %v712 = vmul.f32 %v646, %v295
      %v713 = vmul.f32 %v651, %v296
      %v714 = vmul.f32 %v654, %v297
      %v715 = vmul.f32 %v659, %v298
      %v716 = vmul.f32 %v662, %v299
      %v717 = vmul.f32 %v667, %v300
      %v718 = vmul.f32 %v670, %v301
      %v719 = vmul.f32 %v675, %v302
      %v720 = vmul.f32 %v678, %v303
      %v721 = vmul.f32 %v683, %v304
      %v722 = vmul.f32 %v686, %v305
      %v723 = vmul.f32 %v691, %v306
      %v724 = vmul.f32 %v694, %v307
      %v725 = vsub.f32 %v697, %v711
      %v726 = vsub.f32 %v698, %v712
      %v727 = vsub.f32 %v699, %v713
      %v728 = vsub.f32 %v700, %v714
      %v729 = vsub.f32 %v701, %v715
      %v730 = vsub.f32 %v702, %v716
      %v731 = vsub.f32 %v703, %v717
      %v732 = vsub.f32 %v704, %v718
      %v733 = vsub.f32 %v705, %v719
      %v734 = vsub.f32 %v706, %v720
      %v735 = vsub.f32 %v707, %v721
      %v736 = vsub.f32 %v708, %v722
      %v737 = vsub.f32 %v709, %v723
      %v738 = vsub.f32 %v710, %v724
      %v739 = vpack.c.bf16 %v726, %v725
      %v740 = vpack.c.bf16 %v728, %v727
      %v741 = vpack.c.bf16 %v730, %v729
      %v742 = vpack.c.bf16 %v732, %v731
      %v743 = vpack.c.bf16 %v734, %v733
      %v744 = vpack.c.bf16 %v736, %v735
      %v745 = vpack.c.bf16 %v738, %v737
      %v746 = vmul.f32 %v470, %v294
      %v747 = vmul.f32 %v473, %v295
      %v748 = vmul.f32 %v478, %v296
      %v749 = vmul.f32 %v481, %v297
      %v750 = vmul.f32 %v486, %v298
      %v751 = vmul.f32 %v489, %v299
      %v752 = vmul.f32 %v494, %v300
      %v753 = vmul.f32 %v497, %v301
      %v754 = vmul.f32 %v502, %v302
      %v755 = vmul.f32 %v505, %v303
      %v756 = vmul.f32 %v510, %v304
      %v757 = vmul.f32 %v513, %v305
      %v758 = vmul.f32 %v518, %v306
      %v759 = vmul.f32 %v521, %v307
      %v760 = vmul.f32 %v643, %v279
      %v761 = vmul.f32 %v646, %v280
      %v762 = vmul.f32 %v651, %v281
      %v763 = vmul.f32 %v654, %v282
      %v764 = vmul.f32 %v659, %v283
      %v765 = vmul.f32 %v662, %v284
      %v766 = vmul.f32 %v667, %v285
      %v767 = vmul.f32 %v670, %v286
      %v768 = vmul.f32 %v675, %v287
      %v769 = vmul.f32 %v678, %v288
      %v770 = vmul.f32 %v683, %v289
      %v771 = vmul.f32 %v686, %v290
      %v772 = vmul.f32 %v691, %v291
      %v773 = vmul.f32 %v694, %v292
      %v774 = vadd.f32 %v746, %v760
      %v775 = vadd.f32 %v747, %v761
      %v776 = vadd.f32 %v748, %v762
      %v777 = vadd.f32 %v749, %v763
      %v778 = vadd.f32 %v750, %v764
      %v779 = vadd.f32 %v751, %v765
      %v780 = vadd.f32 %v752, %v766
      %v781 = vadd.f32 %v753, %v767
      %v782 = vadd.f32 %v754, %v768
      %v783 = vadd.f32 %v755, %v769
      %v784 = vadd.f32 %v756, %v770
      %v785 = vadd.f32 %v757, %v771
      %v786 = vadd.f32 %v758, %v772
      %v787 = vadd.f32 %v759, %v773
      %v788 = vpack.c.bf16 %v775, %v774
      %v789 = vpack.c.bf16 %v777, %v776
      %v790 = vpack.c.bf16 %v779, %v778
      %v791 = vpack.c.bf16 %v781, %v780
      %v792 = vpack.c.bf16 %v783, %v782
      %v793 = vpack.c.bf16 %v785, %v784
      %v794 = vpack.c.bf16 %v787, %v786
      %v820 = vunpack.c.l.b16 %v228
      %v821 = vunpack.c.l.b16 %v229
      %v822 = vunpack.c.l.b16 %v230
      %v823 = vunpack.c.l.b16 %v231
      %v824 = vunpack.c.l.b16 %v232
      %v825 = vunpack.c.l.b16 %v233
      %v826 = vunpack.c.l.b16 %v234
      %v827 = vunpack.c.l.b16 %v235
      %v828 = vunpack.c.l.b16 %v236
      %v829 = vunpack.c.l.b16 %v237
      %v830 = vunpack.c.l.b16 %v238
      %v831 = vunpack.c.l.b16 %v239
      %v832 = vunpack.c.l.b16 %v240
      %v833 = vunpack.c.l.b16 %v241
      %v834 = vunpack.c.l.b16 %v242
      %v835 = vunpack.c.l.b16 %v243
      %v836 = vunpack.c.l.b16 %v244
      %v837 = vunpack.c.l.b16 %v245
      %v838 = vunpack.c.l.b16 %v246
      %v839 = vunpack.c.l.b16 %v247
      %v840 = vunpack.c.l.b16 %v248
      %v841 = vunpack.c.l.b16 %v249
      %v842 = vunpack.c.l.b16 %v250
      %v843 = vunpack.c.l.b16 %v251
      %v844 = vunpack.c.l.b16 %v252
      %v845 = vpack.c.b16 %v821, %v820
      %v846 = vpack.c.b16 %v823, %v822
      %v847 = vpack.c.b16 %v825, %v824
      %v848 = vpack.c.b16 %v827, %v826
      %v849 = vpack.c.b16 %v829, %v828
      %v850 = vpack.c.b16 %v831, %v830
      %v851 = vpack.c.b16 %v833, %v832
      %v852 = vpack.c.b16 %v835, %v834
      %v853 = vpack.c.b16 %v837, %v836
      %v854 = vpack.c.b16 %v839, %v838
      %v855 = vpack.c.b16 %v841, %v840
      %v856 = vpack.c.b16 %v843, %v842
      %v857 = vpack.c.b16 %v844, %v844
      %vm858 = vcmask 916480
      %v860 = vsel %vm858, %v845, 0
      %v863 = vsel %vm858, %v846, 0
      %v866 = vsel %vm858, %v847, 0
      %v869 = vsel %vm858, %v848, 0
      %v872 = vsel %vm858, %v849, 0
      %v875 = vsel %vm858, %v850, 0
      %v878 = vsel %vm858, %v851, 0
      %v881 = vsel %vm858, %v852, 0
      %v884 = vsel %vm858, %v853, 0
      %v887 = vsel %vm858, %v854, 0
      %v890 = vsel %vm858, %v855, 0
      %v893 = vsel %vm858, %v856, 0
      %v896 = vsel %vm858, %v857, 0
      %898 = vmatprep.subr.bf16.mxu0 0
      %899 = vmatpush1.bf16.msra.mxu0 %v739
      %900 = vmatprep.subr.bf16.mxu0 0
      %901 = vmatpush1.bf16.msra.mxu0 %v740
      %902 = vmatprep.subr.bf16.mxu0 0
      %903 = vmatpush1.bf16.msra.mxu0 %v741
      %904 = vmatprep.subr.bf16.mxu0 0
      %905 = vmatpush1.bf16.msra.mxu0 %v742
      %906 = vmatprep.subr.bf16.mxu0 0
      %907 = vmatpush1.bf16.msra.mxu0 %v743
      %908 = vmatprep.subr.bf16.mxu0 0
      %909 = vmatpush1.bf16.msra.mxu0 %v744
      %910 = vmatprep.subr.bf16.mxu0 0
      %911 = vmatpush1.bf16.msra.mxu0 %v745
      %912 = vmatprep.subr.bf16.mxu0 0
      %913 = vmatpush1.bf16.msra.mxu0 0
      %914 = vmatprep.subr.bf16.mxu0 0
      %915 = vmatpush1.bf16.msra.mxu0 0
      %916 = vmatprep.subr.bf16.mxu0 0
      %917 = vmatpush1.bf16.msra.mxu0 0
      %918 = vmatprep.subr.bf16.mxu0 0
      %919 = vmatpush1.bf16.msra.mxu0 0
      %920 = vmatprep.subr.bf16.mxu0 0
      %921 = vmatpush1.bf16.msra.mxu0 0
      %922 = vmatprep.subr.bf16.mxu0 0
      %923 = vmatpush1.bf16.msra.mxu0 0
      %924 = vmatprep.subr.bf16.mxu0 0
      %925 = vmatpush1.bf16.msra.mxu0 0
      %926 = vmatprep.subr.bf16.mxu0 0
      %927 = vmatpush1.bf16.msra.mxu0 0
      %928 = vmatprep.subr.bf16.mxu0 0
      %929 = vmatpush1.bf16.msra.mxu0 0
      %930 = vmatprep.mubr.bf16.mxu0 0
      %931 = vmatmul.mubr.bf16.gmra.mrb[0].mxu0 %v860
      %v932 = vpop.f32.mrb[0].mxu0
      %v933 = vadd.f32 0.0, %v932
      %v934 = vpop.f32.mrb[0].mxu0
      %v935 = vpop.f32.mrb[0].mxu0
      %v936 = vadd.f32 0.0, %v935
      %v937 = vpop.f32.mrb[0].mxu0
      %938 = vmatprep.mubr.bf16.mxu0 0
      %939 = vmatmul.mubr.bf16.gmra.mrb[0].mxu0 %v863
      %v940 = vpop.f32.mrb[0].mxu0
      %v941 = vadd.f32 0.0, %v940
      %v942 = vpop.f32.mrb[0].mxu0
      %v943 = vpop.f32.mrb[0].mxu0
      %v944 = vadd.f32 0.0, %v943
      %v945 = vpop.f32.mrb[0].mxu0
      %946 = vmatprep.mubr.bf16.mxu0 0
      %947 = vmatmul.mubr.bf16.gmra.mrb[0].mxu0 %v866
      %v948 = vpop.f32.mrb[0].mxu0
      %v949 = vadd.f32 0.0, %v948
      %v950 = vpop.f32.mrb[0].mxu0
      %v951 = vpop.f32.mrb[0].mxu0
      %v952 = vadd.f32 0.0, %v951
      %v953 = vpop.f32.mrb[0].mxu0
      %954 = vmatprep.mubr.bf16.mxu0 0
      %955 = vmatmul.mubr.bf16.gmra.mrb[0].mxu0 %v869
      %v956 = vpop.f32.mrb[0].mxu0
      %v957 = vadd.f32 0.0, %v956
      %v958 = vpop.f32.mrb[0].mxu0
      %v959 = vpop.f32.mrb[0].mxu0
      %v960 = vadd.f32 0.0, %v959
      %v961 = vpop.f32.mrb[0].mxu0
      %962 = vmatprep.mubr.bf16.mxu0 0
      %963 = vmatmul.mubr.bf16.gmra.mrb[0].mxu0 %v872
      %v964 = vpop.f32.mrb[0].mxu0
      %v965 = vadd.f32 0.0, %v964
      %v966 = vpop.f32.mrb[0].mxu0
      %v967 = vpop.f32.mrb[0].mxu0
      %v968 = vadd.f32 0.0, %v967
      %v969 = vpop.f32.mrb[0].mxu0
      %970 = vmatprep.mubr.bf16.mxu0 0
      %971 = vmatmul.mubr.bf16.gmra.mrb[0].mxu0 %v875
      %v972 = vpop.f32.mrb[0].mxu0
      %v973 = vadd.f32 0.0, %v972
      %v974 = vpop.f32.mrb[0].mxu0
      %v975 = vpop.f32.mrb[0].mxu0
      %v976 = vadd.f32 0.0, %v975
      %v977 = vpop.f32.mrb[0].mxu0
      %978 = vmatprep.mubr.bf16.mxu0 0
      %979 = vmatmul.mubr.bf16.gmra.mrb[0].mxu0 %v878
      %v980 = vpop.f32.mrb[0].mxu0
      %v981 = vadd.f32 0.0, %v980
      %v982 = vpop.f32.mrb[0].mxu0
      %v983 = vpop.f32.mrb[0].mxu0
      %v984 = vadd.f32 0.0, %v983
      %v985 = vpop.f32.mrb[0].mxu0
      %986 = vmatprep.mubr.bf16.mxu0 0
      %987 = vmatmul.mubr.bf16.gmra.mrb[0].mxu0 %v881
      %v988 = vpop.f32.mrb[0].mxu0
      %v989 = vadd.f32 0.0, %v988
      %v990 = vpop.f32.mrb[0].mxu0
      %v991 = vpop.f32.mrb[0].mxu0
      %v992 = vadd.f32 0.0, %v991
      %v993 = vpop.f32.mrb[0].mxu0
      %994 = vmatprep.mubr.bf16.mxu0 0
      %995 = vmatmul.mubr.bf16.gmra.mrb[0].mxu0 %v884
      %v996 = vpop.f32.mrb[0].mxu0
      %v997 = vadd.f32 0.0, %v996
      %v998 = vpop.f32.mrb[0].mxu0
      %v999 = vpop.f32.mrb[0].mxu0
      %v1000 = vadd.f32 0.0, %v999
      %v1001 = vpop.f32.mrb[0].mxu0
      %1002 = vmatprep.mubr.bf16.mxu0 0
      %1003 = vmatmul.mubr.bf16.gmra.mrb[0].mxu0 %v887
      %v1004 = vpop.f32.mrb[0].mxu0
      %v1005 = vadd.f32 0.0, %v1004
      %v1006 = vpop.f32.mrb[0].mxu0
      %v1007 = vpop.f32.mrb[0].mxu0
      %v1008 = vadd.f32 0.0, %v1007
      %v1009 = vpop.f32.mrb[0].mxu0
      %1010 = vmatprep.mubr.bf16.mxu0 0
      %1011 = vmatmul.mubr.bf16.gmra.mrb[0].mxu0 %v890
      %v1012 = vpop.f32.mrb[0].mxu0
      %v1013 = vadd.f32 0.0, %v1012
      %v1014 = vpop.f32.mrb[0].mxu0
      %v1015 = vpop.f32.mrb[0].mxu0
      %v1016 = vadd.f32 0.0, %v1015
      %v1017 = vpop.f32.mrb[0].mxu0
      %1018 = vmatprep.mubr.bf16.mxu0 0
      %1019 = vmatmul.mubr.bf16.gmra.mrb[0].mxu0 %v893
      %v1020 = vpop.f32.mrb[0].mxu0
      %v1021 = vadd.f32 0.0, %v1020
      %v1022 = vpop.f32.mrb[0].mxu0
      %v1023 = vpop.f32.mrb[0].mxu0
      %v1024 = vadd.f32 0.0, %v1023
      %v1025 = vpop.f32.mrb[0].mxu0
      %1026 = vmatprep.mubr.bf16.mxu0 0
      %1027 = vmatmul.mubr.bf16.gmra.mrb[0].mxu0 %v896
      %v1028 = vpop.f32.mrb[0].mxu0
      %v1029 = vadd.f32 0.0, %v1028
      %v1030 = vpop.f32.mrb[0].mxu0
      %v1031 = vpop.f32.mrb[0].mxu0
      %v1032 = vpop.f32.mrb[0].mxu0
      %1033 = vdwg.mxu0
      %v1059 = vunpack.c.l.b16 %v254
      %v1060 = vunpack.c.l.b16 %v255
      %v1061 = vunpack.c.l.b16 %v256
      %v1062 = vunpack.c.l.b16 %v257
      %v1063 = vunpack.c.l.b16 %v258
      %v1064 = vunpack.c.l.b16 %v259
      %v1065 = vunpack.c.l.b16 %v260
      %v1066 = vunpack.c.l.b16 %v261
      %v1067 = vunpack.c.l.b16 %v262
      %v1068 = vunpack.c.l.b16 %v263
      %v1069 = vunpack.c.l.b16 %v264
      %v1070 = vunpack.c.l.b16 %v265
      %v1071 = vunpack.c.l.b16 %v266
      %v1072 = vunpack.c.l.b16 %v267
      %v1073 = vunpack.c.l.b16 %v268
      %v1074 = vunpack.c.l.b16 %v269
      %v1075 = vunpack.c.l.b16 %v270
      %v1076 = vunpack.c.l.b16 %v271
      %v1077 = vunpack.c.l.b16 %v272
      %v1078 = vunpack.c.l.b16 %v273
      %v1079 = vunpack.c.l.b16 %v274
      %v1080 = vunpack.c.l.b16 %v275
      %v1081 = vunpack.c.l.b16 %v276
      %v1082 = vunpack.c.l.b16 %v277
      %v1083 = vunpack.c.l.b16 %v278
      %v1084 = vpack.c.b16 %v1060, %v1059
      %v1085 = vpack.c.b16 %v1062, %v1061
      %v1086 = vpack.c.b16 %v1064, %v1063
      %v1087 = vpack.c.b16 %v1066, %v1065
      %v1088 = vpack.c.b16 %v1068, %v1067
      %v1089 = vpack.c.b16 %v1070, %v1069
      %v1090 = vpack.c.b16 %v1072, %v1071
      %v1091 = vpack.c.b16 %v1074, %v1073
      %v1092 = vpack.c.b16 %v1076, %v1075
      %v1093 = vpack.c.b16 %v1078, %v1077
      %v1094 = vpack.c.b16 %v1080, %v1079
      %v1095 = vpack.c.b16 %v1082, %v1081
      %v1096 = vpack.c.b16 %v1083, %v1083
      %v1098 = vsel %vm858, %v1084, 0
      %v1101 = vsel %vm858, %v1085, 0
      %v1104 = vsel %vm858, %v1086, 0
      %v1107 = vsel %vm858, %v1087, 0
      %v1110 = vsel %vm858, %v1088, 0
      %v1113 = vsel %vm858, %v1089, 0
      %v1116 = vsel %vm858, %v1090, 0
      %v1119 = vsel %vm858, %v1091, 0
      %v1122 = vsel %vm858, %v1092, 0
      %v1125 = vsel %vm858, %v1093, 0
      %v1128 = vsel %vm858, %v1094, 0
      %v1131 = vsel %vm858, %v1095, 0
      %v1134 = vsel %vm858, %v1096, 0
      %1136 = vmatprep.subr.bf16.mxu0 0
      %1137 = vmatpush1.bf16.msra.mxu0 %v788
      %1138 = vmatprep.subr.bf16.mxu0 0
      %1139 = vmatpush1.bf16.msra.mxu0 %v789
      %1140 = vmatprep.subr.bf16.mxu0 0
      %1141 = vmatpush1.bf16.msra.mxu0 %v790
      %1142 = vmatprep.subr.bf16.mxu0 0
      %1143 = vmatpush1.bf16.msra.mxu0 %v791
      %1144 = vmatprep.subr.bf16.mxu0 0
      %1145 = vmatpush1.bf16.msra.mxu0 %v792
      %1146 = vmatprep.subr.bf16.mxu0 0
      %1147 = vmatpush1.bf16.msra.mxu0 %v793
      %1148 = vmatprep.subr.bf16.mxu0 0
      %1149 = vmatpush1.bf16.msra.mxu0 %v794
      %1150 = vmatprep.subr.bf16.mxu0 0
      %1151 = vmatpush1.bf16.msra.mxu0 0
      %1152 = vmatprep.subr.bf16.mxu0 0
      %1153 = vmatpush1.bf16.msra.mxu0 0
      %1154 = vmatprep.subr.bf16.mxu0 0
      %1155 = vmatpush1.bf16.msra.mxu0 0
      %1156 = vmatprep.subr.bf16.mxu0 0
      %1157 = vmatpush1.bf16.msra.mxu0 0
      %1158 = vmatprep.subr.bf16.mxu0 0
      %1159 = vmatpush1.bf16.msra.mxu0 0
      %1160 = vmatprep.subr.bf16.mxu0 0
      %1161 = vmatpush1.bf16.msra.mxu0 0
      %1162 = vmatprep.subr.bf16.mxu0 0
      %1163 = vmatpush1.bf16.msra.mxu0 0
      %1164 = vmatprep.subr.bf16.mxu0 0
      %1165 = vmatpush1.bf16.msra.mxu0 0
      %1166 = vmatprep.subr.bf16.mxu0 0
      %1167 = vmatpush1.bf16.msra.mxu0 0
      %1168 = vmatprep.mubr.bf16.mxu0 0
      %1169 = vmatmul.mubr.bf16.gmra.mrb[0].mxu0 %v1098
      %v1170 = vpop.f32.mrb[0].mxu0
      %v1171 = vadd.f32 0.0, %v1170
      %v1172 = vpop.f32.mrb[0].mxu0
      %v1173 = vpop.f32.mrb[0].mxu0
      %v1174 = vadd.f32 0.0, %v1173
      %v1175 = vpop.f32.mrb[0].mxu0
      %1176 = vmatprep.mubr.bf16.mxu0 0
      %1177 = vmatmul.mubr.bf16.gmra.mrb[0].mxu0 %v1101
      %v1178 = vpop.f32.mrb[0].mxu0
      %v1179 = vadd.f32 0.0, %v1178
      %v1180 = vpop.f32.mrb[0].mxu0
      %v1181 = vpop.f32.mrb[0].mxu0
      %v1182 = vadd.f32 0.0, %v1181
      %v1183 = vpop.f32.mrb[0].mxu0
      %1184 = vmatprep.mubr.bf16.mxu0 0
      %1185 = vmatmul.mubr.bf16.gmra.mrb[0].mxu0 %v1104
      %v1186 = vpop.f32.mrb[0].mxu0
      %v1187 = vadd.f32 0.0, %v1186
      %v1188 = vpop.f32.mrb[0].mxu0
      %v1189 = vpop.f32.mrb[0].mxu0
      %v1190 = vadd.f32 0.0, %v1189
      %v1191 = vpop.f32.mrb[0].mxu0
      %1192 = vmatprep.mubr.bf16.mxu0 0
      %1193 = vmatmul.mubr.bf16.gmra.mrb[0].mxu0 %v1107
      %v1194 = vpop.f32.mrb[0].mxu0
      %v1195 = vadd.f32 0.0, %v1194
      %v1196 = vpop.f32.mrb[0].mxu0
      %v1197 = vpop.f32.mrb[0].mxu0
      %v1198 = vadd.f32 0.0, %v1197
      %v1199 = vpop.f32.mrb[0].mxu0
      %1200 = vmatprep.mubr.bf16.mxu0 0
      %1201 = vmatmul.mubr.bf16.gmra.mrb[0].mxu0 %v1110
      %v1202 = vpop.f32.mrb[0].mxu0
      %v1203 = vadd.f32 0.0, %v1202
      %v1204 = vpop.f32.mrb[0].mxu0
      %v1205 = vpop.f32.mrb[0].mxu0
      %v1206 = vadd.f32 0.0, %v1205
      %v1207 = vpop.f32.mrb[0].mxu0
      %1208 = vmatprep.mubr.bf16.mxu0 0
      %1209 = vmatmul.mubr.bf16.gmra.mrb[0].mxu0 %v1113
      %v1210 = vpop.f32.mrb[0].mxu0
      %v1211 = vadd.f32 0.0, %v1210
      %v1212 = vpop.f32.mrb[0].mxu0
      %v1213 = vpop.f32.mrb[0].mxu0
      %v1214 = vadd.f32 0.0, %v1213
      %v1215 = vpop.f32.mrb[0].mxu0
      %1216 = vmatprep.mubr.bf16.mxu0 0
      %1217 = vmatmul.mubr.bf16.gmra.mrb[0].mxu0 %v1116
      %v1218 = vpop.f32.mrb[0].mxu0
      %v1219 = vadd.f32 0.0, %v1218
      %v1220 = vpop.f32.mrb[0].mxu0
      %v1221 = vpop.f32.mrb[0].mxu0
      %v1222 = vadd.f32 0.0, %v1221
      %v1223 = vpop.f32.mrb[0].mxu0
      %1224 = vmatprep.mubr.bf16.mxu0 0
      %1225 = vmatmul.mubr.bf16.gmra.mrb[0].mxu0 %v1119
      %v1226 = vpop.f32.mrb[0].mxu0
      %v1227 = vadd.f32 0.0, %v1226
      %v1228 = vpop.f32.mrb[0].mxu0
      %v1229 = vpop.f32.mrb[0].mxu0
      %v1230 = vadd.f32 0.0, %v1229
      %v1231 = vpop.f32.mrb[0].mxu0
      %1232 = vmatprep.mubr.bf16.mxu0 0
      %1233 = vmatmul.mubr.bf16.gmra.mrb[0].mxu0 %v1122
      %v1234 = vpop.f32.mrb[0].mxu0
      %v1235 = vadd.f32 0.0, %v1234
      %v1236 = vpop.f32.mrb[0].mxu0
      %v1237 = vpop.f32.mrb[0].mxu0
      %v1238 = vadd.f32 0.0, %v1237
      %v1239 = vpop.f32.mrb[0].mxu0
      %1240 = vmatprep.mubr.bf16.mxu0 0
      %1241 = vmatmul.mubr.bf16.gmra.mrb[0].mxu0 %v1125
      %v1242 = vpop.f32.mrb[0].mxu0
      %v1243 = vadd.f32 0.0, %v1242
      %v1244 = vpop.f32.mrb[0].mxu0
      %v1245 = vpop.f32.mrb[0].mxu0
      %v1246 = vadd.f32 0.0, %v1245
      %v1247 = vpop.f32.mrb[0].mxu0
      %1248 = vmatprep.mubr.bf16.mxu0 0
      %1249 = vmatmul.mubr.bf16.gmra.mrb[0].mxu0 %v1128
      %v1250 = vpop.f32.mrb[0].mxu0
      %v1251 = vadd.f32 0.0, %v1250
      %v1252 = vpop.f32.mrb[0].mxu0
      %v1253 = vpop.f32.mrb[0].mxu0
      %v1254 = vadd.f32 0.0, %v1253
      %v1255 = vpop.f32.mrb[0].mxu0
      %1256 = vmatprep.mubr.bf16.mxu0 0
      %1257 = vmatmul.mubr.bf16.gmra.mrb[0].mxu0 %v1131
      %v1258 = vpop.f32.mrb[0].mxu0
      %v1259 = vadd.f32 0.0, %v1258
      %v1260 = vpop.f32.mrb[0].mxu0
      %v1261 = vpop.f32.mrb[0].mxu0
      %v1262 = vadd.f32 0.0, %v1261
      %v1263 = vpop.f32.mrb[0].mxu0
      %1264 = vmatprep.mubr.bf16.mxu0 0
      %1265 = vmatmul.mubr.bf16.gmra.mrb[0].mxu0 %v1134
      %v1266 = vpop.f32.mrb[0].mxu0
      %v1267 = vadd.f32 0.0, %v1266
      %v1268 = vpop.f32.mrb[0].mxu0
      %v1269 = vpop.f32.mrb[0].mxu0
      %v1270 = vpop.f32.mrb[0].mxu0
      %1271 = vdwg.mxu0
      %v1272 = vsub.f32 %v933, %v1171
      %v1273 = vsub.f32 %v936, %v1174
      %v1274 = vsub.f32 %v941, %v1179
      %v1275 = vsub.f32 %v944, %v1182
      %v1276 = vsub.f32 %v949, %v1187
      %v1277 = vsub.f32 %v952, %v1190
      %v1278 = vsub.f32 %v957, %v1195
      %v1279 = vsub.f32 %v960, %v1198
      %v1280 = vsub.f32 %v965, %v1203
      %v1281 = vsub.f32 %v968, %v1206
      %v1282 = vsub.f32 %v973, %v1211
      %v1283 = vsub.f32 %v976, %v1214
      %v1284 = vsub.f32 %v981, %v1219
      %v1285 = vsub.f32 %v984, %v1222
      %v1286 = vsub.f32 %v989, %v1227
      %v1287 = vsub.f32 %v992, %v1230
      %v1288 = vsub.f32 %v997, %v1235
      %v1289 = vsub.f32 %v1000, %v1238
      %v1290 = vsub.f32 %v1005, %v1243
      %v1291 = vsub.f32 %v1008, %v1246
      %v1292 = vsub.f32 %v1013, %v1251
      %v1293 = vsub.f32 %v1016, %v1254
      %v1294 = vsub.f32 %v1021, %v1259
      %v1295 = vsub.f32 %v1024, %v1262
      %v1296 = vsub.f32 %v1029, %v1267
      %vm1297 = vcmask 130048
      %1298 = vst.msk [vmem:[%s197] sm:$0xff] %vm1297, %v1272
      %1299 = vst.msk [vmem:[%s197 + $0x8] sm:$0xff] %vm1297, %v1273
      %1300 = vst.msk [vmem:[%s197 + $0x10] sm:$0xff] %vm1297, %v1274
      %1301 = vst.msk [vmem:[%s197 + $0x18] sm:$0xff] %vm1297, %v1275
      %1302 = vst.msk [vmem:[%s197 + $0x20] sm:$0xff] %vm1297, %v1276
      %1303 = vst.msk [vmem:[%s197 + $0x28] sm:$0xff] %vm1297, %v1277
      %1304 = vst.msk [vmem:[%s197 + $0x30] sm:$0xff] %vm1297, %v1278
      %1305 = vst.msk [vmem:[%s197 + $0x38] sm:$0xff] %vm1297, %v1279
      %1306 = vst.msk [vmem:[%s197 + $0x40] sm:$0xff] %vm1297, %v1280
      %1307 = vst.msk [vmem:[%s197 + $0x48] sm:$0xff] %vm1297, %v1281
      %1308 = vst.msk [vmem:[%s197 + $0x50] sm:$0xff] %vm1297, %v1282
      %1309 = vst.msk [vmem:[%s197 + $0x58] sm:$0xff] %vm1297, %v1283
      %1310 = vst.msk [vmem:[%s197 + $0x60] sm:$0xff] %vm1297, %v1284
      %1311 = vst.msk [vmem:[%s197 + $0x68] sm:$0xff] %vm1297, %v1285
      %1312 = vst.msk [vmem:[%s197 + $0x70] sm:$0xff] %vm1297, %v1286
      %1313 = vst.msk [vmem:[%s197 + $0x78] sm:$0xff] %vm1297, %v1287
      %1314 = vst.msk [vmem:[%s197 + $0x80] sm:$0xff] %vm1297, %v1288
      %1315 = vst.msk [vmem:[%s197 + $0x88] sm:$0xff] %vm1297, %v1289
      %1316 = vst.msk [vmem:[%s197 + $0x90] sm:$0xff] %vm1297, %v1290
      %1317 = vst.msk [vmem:[%s197 + $0x98] sm:$0xff] %vm1297, %v1291
      %1318 = vst.msk [vmem:[%s197 + $0xa0] sm:$0xff] %vm1297, %v1292
      %1319 = vst.msk [vmem:[%s197 + $0xa8] sm:$0xff] %vm1297, %v1293
      %1320 = vst.msk [vmem:[%s197 + $0xb0] sm:$0xff] %vm1297, %v1294
      %1321 = vst.msk [vmem:[%s197 + $0xb8] sm:$0xff] %vm1297, %v1295
      %vm1322 = vcmask 125952
      %1323 = vst.msk [vmem:[%s197 + $0xc0] sm:$0xf] %vm1322, %v1296
      %p1324 = scmp.lt.s32.totalorder %s15, 1
      %s1325 = scalar_select %p1324, %s15, 1
      %s1326 = smul.addr %s1325, 25
      %s1327 = smul.addr %s1326, 8
      %s1328 = scalar_lea.vmem %s4, %s1327
      // Predicated region
      $region37: #{tpu_custom_call.1} parent=35 // pred_check
        %p1329 = pneg %p122
      $region38: #{tpu_custom_call.1} parent=35 // pred_check_branch
        %1331 = sbr.rel (%p1329) target = $region40
      $region39: #{tpu_custom_call.1} parent=35 // pred_region
        _
      $region40: #{tpu_custom_call.1} parent=35 // pred_fallthru
        _
    $region36: #{tpu_custom_call.1} parent=5 // pred_fallthru
      _
    %p1332 = scmp.le.s32.totalorder 2, %s10
    // Predicated region
    $region41: #{tpu_custom_call.1} parent=5 // pred_check
      %p1333 = pneg %p1332
    $region42: #{tpu_custom_call.1} parent=5 // pred_check_branch
      %1335 = sbr.rel (%p1333) target = $region44
    $region43: #{tpu_custom_call.1} parent=5 // pred_region
      %s1336 = ssub.s32 %s10, 2
      // Predicated region
      $region45: #{tpu_custom_call.1} parent=43 // pred_check
        %p1337 = pneg %p128
      $region46: #{tpu_custom_call.1} parent=43 // pred_check_branch
        %1339 = sbr.rel (%p1337) target = $region48
      $region47: #{tpu_custom_call.1} parent=43 // pred_region
        %p1340 = scmp.lt.s32.totalorder %s16, 1
        %s1341 = scalar_select %p1340, %s16, 1
        %s1342 = smul.addr %s1341, 25
        %s1343 = smul.addr %s1342, 8
        %s1344 = scalar_lea.vmem %s4, %s1343
      $region48: #{tpu_custom_call.1} parent=43 // pred_fallthru
        _
    $region44: #{tpu_custom_call.1} parent=5 // pred_fallthru
      _
  $region6: #{tpu_custom_call.1} parent=0 // loop_footer
    %s14 = sadd.s32 1, %s10
  $region7: #{tpu_custom_call.1} parent=0 // loop_footer_branch
    %9 = sbr.rel target = $region3
  $region8: #{tpu_custom_call.1} parent=0 // loop_exit
    _

</llo_original>
